<compile_context>
chip_gen: v7x
topology: tpu7x:2x2x1
jax: 0.10.0
libtpu: 0.0.40
codegen_flags: <defaults>
</compile_context>

<pallas_src>
import functools

import jax
import jax.numpy as jnp
from jax import lax
from jax.experimental import pallas as pl
from jax.experimental.pallas import tpu as pltpu


# ---------------------------------------------------------------------------
# Kernel
# ---------------------------------------------------------------------------

def _make_rotate_kernel(n_angle_inputs: int, has_offset: bool):
  """Elementwise kernel: base * [cos, sin](sum(angle tiles) [+ per-dim offset]).

  Ref layout per grid step (all f32):
    refs[0 : n_angle_inputs]   (1, TS, DL)  angle tiles (angles [, word_angles])
    [refs[n_angle_inputs]]     (1, DL)      per-dim phase offset (time vector)
    refs[-3]                   (1, DL)      base vector
    refs[-2], refs[-1]         (1, TS, DL)  real / imag output tiles
  """

  def kernel(*refs):
    idx = 0
    total = refs[idx][...]
    idx += 1
    for _ in range(n_angle_inputs - 1):
      total = total + refs[idx][...]
      idx += 1
    if has_offset:
      total = total + refs[idx][...]          # (1, DL) broadcasts over TS
      idx += 1
    base = refs[idx][...]                     # (1, DL) broadcasts over TS
    idx += 1
    out_r_ref, out_i_ref = refs[idx], refs[idx + 1]
    out_r_ref[...] = (base * jnp.cos(total)).astype(out_r_ref.dtype)
    out_i_ref[...] = (base * jnp.sin(total)).astype(out_i_ref.dtype)

  return kernel


# ---------------------------------------------------------------------------
# Tiling helpers
# ---------------------------------------------------------------------------

_LANES = 128
_MAX_FOLDED_LANES = 512                       # fold seq into lanes up to this
_BLOCK_BYTES_TARGET = 2 * 1024 * 1024         # per streamed array per block


def _fold_factor(seq: int, dim: int) -> int:
  """How many consecutive sequence rows to fold into the lane axis."""
  if dim >= _LANES or _LANES % dim != 0:
    return 1
  k = _LANES // dim
  if seq % k != 0:
    return 1
  while (2 * k * dim) <= _MAX_FOLDED_LANES and seq % (2 * k) == 0:
    k *= 2
  return k


def _pick_seq_tile(seq_l: int, dim_l: int) -> int:
  """Largest legal seq tile (multiple of 8 dividing seq_l) under the budget."""
  max_rows = max(1, _BLOCK_BYTES_TARGET // (dim_l * 4))
  if seq_l <= max_rows:
    return seq_l                              # full axis is always legal
  ts = (max_rows // 8) * 8
  while ts >= 8:
    if seq_l % ts == 0:
      return ts
    ts -= 8
  return seq_l                                # fallback: whole axis


# ---------------------------------------------------------------------------
# Pallas wrapper (returns f32 (real, imag) planes - no extra HBM pass)
# ---------------------------------------------------------------------------

@functools.partial(
    jax.jit, static_argnames=("add_time_angles", "local_coordinating"))
def output_forward_planes(angles, base_vec, time_vec=None, word_angles=None,
                          *, add_time_angles=False, local_coordinating=False):
  """Pallas Output.forward.

  angles:      (B, S, D) f32
  base_vec:    (1, D)    f32
  time_vec:    (1, D)    f32   (used iff add_time_angles)
  word_angles: (B, S, D) f32   (used iff local_coordinating)

  Returns (real, imag), each (B, S, D) f32, such that
      real + i*imag == base_vec * exp(i * total_angles).
  """
  B, S, D = angles.shape
  angles = angles.astype(jnp.float32)

  if local_coordinating and word_angles is None:
    raise ValueError("word_angles is required when local_coordinating=True")
  if add_time_angles and time_vec is None:
    raise ValueError("time_vec is required when add_time_angles=True")

  # Lane-dense folding: (B, S, D) -> (B, S/k, k*D) with k*D a multiple of 128.
  k = _fold_factor(S, D)
  SL, DL = S // k, D * k

  def fold(x):
    return x.reshape(B, SL, DL)

  def fold_vec(v):
    v = v.reshape(1, D).astype(jnp.float32)
    return jnp.tile(v, (1, k)) if k > 1 else v

  angle_inputs = [fold(angles)]
  if local_coordinating:
    angle_inputs.append(fold(word_angles.astype(jnp.float32)))

  ts = _pick_seq_tile(SL, DL)
  grid = (B, SL // ts)

  tile_spec = pl.BlockSpec((1, ts, DL), lambda b, s: (b, s, 0))
  vec_spec = pl.BlockSpec((1, DL), lambda b, s: (0, 0))

  inputs = list(angle_inputs)
  in_specs = [tile_spec] * len(angle_inputs)
  if add_time_angles:
    inputs.append(fold_vec(time_vec))
    in_specs.append(vec_spec)
  inputs.append(fold_vec(base_vec))
  in_specs.append(vec_spec)

  kernel = _make_rotate_kernel(len(angle_inputs), add_time_angles)

  n_streamed = len(angle_inputs) + 2          # full-size inputs + 2 outputs
  cost = pl.CostEstimate(
      flops=4 * B * S * D,
      transcendentals=2 * B * S * D,
      bytes_accessed=n_streamed * B * S * D * 4)

  out_r, out_i = pl.pallas_call(
      kernel,
      out_shape=(jax.ShapeDtypeStruct((B, SL, DL), jnp.float32),
                 jax.ShapeDtypeStruct((B, SL, DL), jnp.float32)),
      grid_spec=pltpu.PrefetchScalarGridSpec(
          num_scalar_prefetch=0,
          grid=grid,
          in_specs=in_specs,
          out_specs=[tile_spec, tile_spec]),
      compiler_params=pltpu.CompilerParams(
          dimension_semantics=("parallel", "parallel"),
          vmem_limit_bytes=32 * 1024 * 1024),
      cost_estimate=cost,
  )(*inputs)

  return out_r.reshape(B, S, D), out_i.reshape(B, S, D)


# ---------------------------------------------------------------------------
# Module-level API mirroring the PyTorch class
# ---------------------------------------------------------------------------

class OutputParams:
  """Deterministic parameter container mirroring the PyTorch module __init__."""

  def __init__(self, vocab_size, dim=64, rotary_denom=0.5,
               local_coordinating=False, add_time_angles=False, key=None):
    self.dim = dim
    self.vocab_size = vocab_size
    self.local_coordinating = local_coordinating
    self.add_time_angles = add_time_angles

    if key is None:
      key = jax.random.PRNGKey(0)
    k_base, k_er, k_ei = jax.random.split(key, 3)

    self.dimension_indices = jnp.arange(dim, dtype=jnp.float32)
    self.log_rotary_denom = jnp.asarray(rotary_denom, dtype=jnp.float32)
    self.base_vec = jax.random.normal(k_base, (1, dim), dtype=jnp.float32)
    # Embeddings are not used in forward(); kept only for shape fidelity.
    self.embedding_real = jax.random.normal(k_er, (vocab_size, dim),
                                            dtype=jnp.float32)
    self.embedding_imag = jax.random.normal(k_ei, (vocab_size, dim),
                                            dtype=jnp.float32)


def _time_vec(params: OutputParams):
  # 1 / (e ** log_rotary_denom) ** (idx / dim) == exp(-log_rotary_denom*idx/dim)
  return jnp.exp(
      -params.log_rotary_denom * params.dimension_indices / params.dim
  ).reshape(1, params.dim).astype(jnp.float32)


def output_module_forward_planes(params: OutputParams, angles,
                                 word_angles=None):
  """Recommended fast path: returns (real, imag) f32 planes (no extra pass)."""
  time_vec = _time_vec(params) if params.add_time_angles else None
  if not params.local_coordinating:
    word_angles = None                        # never materialize unused zeros
  return output_forward_planes(
      angles, params.base_vec, time_vec, word_angles,
      add_time_angles=params.add_time_angles,
      local_coordinating=params.local_coordinating)


def output_module_forward(params: OutputParams, angles, word_angles=None):
  """Exact parity with the PyTorch module (complex64 output).

  The final lax.complex is one extra elementwise pass over the output; callers
  that can consume (real, imag) planes should use output_module_forward_planes.
  """
  out_r, out_i = output_module_forward_planes(params, angles, word_angles)
  return lax.complex(out_r, out_i)


# ---------------------------------------------------------------------------
# Self-test
# ---------------------------------------------------------------------------

if __name__ == "__main__":
  key = jax.random.PRNGKey(0)
  k_params, k_angles, k_word = jax.random.split(key, 3)

  B, S, D = 2, 8, 32
  vocab_size = 100

  angles = jax.random.normal(k_angles, (B, S, D), dtype=jnp.float32)
  word_angles = jax.random.normal(k_word, (B, S, D), dtype=jnp.float32)

  # Config 1: default flags (no time angles, no local coordinating).
  params = OutputParams(vocab_size, dim=D, rotary_denom=0.5, key=k_params)
  out = jax.block_until_ready(output_module_forward(params, angles))
  ref = params.base_vec * lax.complex(jnp.cos(angles), jnp.sin(angles))
  assert out.dtype == jnp.complex64
  assert out.shape == (B, S, D)
  assert jnp.allclose(out, ref, atol=1e-5, rtol=1e-5)

  # Config 2: add_time_angles=True, local_coordinating=True.
  params2 = OutputParams(vocab_size, dim=D, rotary_denom=0.5,
                         local_coordinating=True, add_time_angles=True,
                         key=k_params)
  out2 = jax.block_until_ready(
      output_module_forward(params2, angles, word_angles))
  tvec = jnp.exp(-params2.log_rotary_denom * params2.dimension_indices / D)
  total = angles + tvec.reshape(1, 1, D) + word_angles
  ref2 = params2.base_vec * lax.complex(jnp.cos(total), jnp.sin(total))
  assert out2.dtype == jnp.complex64
  assert out2.shape == (B, S, D)
  assert jnp.allclose(out2, ref2, atol=1e-5, rtol=1e-5)

  print("KERNEL_OK")
</pallas_src>

<mosaic_0001>
module attributes {stable_mosaic.version = 11 : i64} {
  func.func @kernel(%arg0: i32, %arg1: i32, %arg2: memref<1x1x256xf32, #tpu.memory_space<vmem>>, %arg3: memref<1x256xf32, #tpu.memory_space<vmem>>, %arg4: memref<1x1x256xf32, #tpu.memory_space<vmem>>, %arg5: memref<1x1x256xf32, #tpu.memory_space<vmem>>) attributes {dimension_semantics = [#tpu.dimension_semantics<parallel>, #tpu.dimension_semantics<parallel>], iteration_bounds = array<i64: 2, 1>, scalar_prefetch = 0 : i64, scratch_operands = 0 : i64, tpu.core_type = #tpu.core_type<tc>, window_params = [{transform_indices = @transform_0, window_bounds = array<i64: 1, 1, 256>}, {pipeline_mode = #tpu.pipeline_mode<synchronous>, transform_indices = @transform_1, window_bounds = array<i64: 1, 256>}, {transform_indices = @transform_2, window_bounds = array<i64: 1, 1, 256>}, {transform_indices = @transform_3, window_bounds = array<i64: 1, 1, 256>}]} {
    %c0 = arith.constant 0 : index
    %c0_0 = arith.constant 0 : index
    %c0_1 = arith.constant 0 : index
    %0 = vector.load %arg2[%c0, %c0_0, %c0_1] : memref<1x1x256xf32, #tpu.memory_space<vmem>>, vector<1x1x256xf32>
    %c0_2 = arith.constant 0 : index
    %c0_3 = arith.constant 0 : index
    %1 = vector.load %arg3[%c0_2, %c0_3] : memref<1x256xf32, #tpu.memory_space<vmem>>, vector<1x256xf32>
    %2 = math.cos %0 : vector<1x1x256xf32>
    %3 = vector.shape_cast %1 : vector<1x256xf32> to vector<1x1x256xf32>
    %4 = arith.mulf %3, %2 : vector<1x1x256xf32>
    %c0_4 = arith.constant 0 : index
    %c0_5 = arith.constant 0 : index
    %c0_6 = arith.constant 0 : index
    %5 = vector.load %arg4[%c0_4, %c0_5, %c0_6] : memref<1x1x256xf32, #tpu.memory_space<vmem>>, vector<1x1x256xf32>
    tpu.vector_store %arg4[%c0_4, %c0_5, %c0_6], %4 {strides = array<i32>} : memref<1x1x256xf32, #tpu.memory_space<vmem>>, vector<1x1x256xf32>,
    %6 = math.sin %0 : vector<1x1x256xf32>
    %7 = vector.shape_cast %1 : vector<1x256xf32> to vector<1x1x256xf32>
    %8 = arith.mulf %7, %6 : vector<1x1x256xf32>
    %c0_7 = arith.constant 0 : index
    %c0_8 = arith.constant 0 : index
    %c0_9 = arith.constant 0 : index
    %9 = vector.load %arg5[%c0_7, %c0_8, %c0_9] : memref<1x1x256xf32, #tpu.memory_space<vmem>>, vector<1x1x256xf32>
    tpu.vector_store %arg5[%c0_7, %c0_8, %c0_9], %8 {strides = array<i32>} : memref<1x1x256xf32, #tpu.memory_space<vmem>>, vector<1x1x256xf32>,
    return
  }
  func.func @transform_0(%arg0: i32, %arg1: i32) -> (i32, i32, i32) {
    %c0_i32 = arith.constant 0 : i32
    %c0_i32_0 = arith.constant 0 : i32
    return %arg0, %arg1, %c0_i32 : i32, i32, i32
  }
  func.func @transform_1(%arg0: i32, %arg1: i32) -> (i32, i32) {
    %c0_i32 = arith.constant 0 : i32
    %c0_i32_0 = arith.constant 0 : i32
    %c0_i32_1 = arith.constant 0 : i32
    return %c0_i32, %c0_i32_0 : i32, i32
  }
  func.func @transform_2(%arg0: i32, %arg1: i32) -> (i32, i32, i32) {
    %c0_i32 = arith.constant 0 : i32
    %c0_i32_0 = arith.constant 0 : i32
    return %arg0, %arg1, %c0_i32 : i32, i32, i32
  }
  func.func @transform_3(%arg0: i32, %arg1: i32) -> (i32, i32, i32) {
    %c0_i32 = arith.constant 0 : i32
    %c0_i32_0 = arith.constant 0 : i32
    return %arg0, %arg1, %c0_i32 : i32, i32, i32
  }
}

</mosaic_0001>

<llo_original>
// kernel: output_forward_planes.1
$region0: #{output_forward_planes.1}
  #allocation0 [shape = 'u32[]', space=smem, size = 0x4, offset = 0x4, fixed_abs, tag = 'smem constant byte address 0x4 - core index']
  #allocation1 [shape = 'u32[144,128]{1,0:T(1,128)}', space=vmem, size = 0x12000, scoped, tag = 'internal scratch']
  %s0 = inlined_call_operand.vmem [shape: f32[2,1,256], index: 0, kind: input, shape index: {}]
  %s1 = inlined_call_operand.vmem [shape: f32[1,256], index: 1, kind: input, shape index: {}]
  %s2 = inlined_call_operand.vmem [shape: f32[2,1,256], index: 2, kind: output, shape index: {0}]
  %s3 = inlined_call_operand.vmem [shape: f32[2,1,256], index: 3, kind: output, shape index: {1}]
  %4 = xla_tuple %s2, %s3
  %s5 = sld [smem:[#allocation0]]
  $region49: #{output_forward_planes.1} parent=0
    _
  %s7 = ssub.s32 1, %s5
  %s8 = scalar_select 0, %s7, %s5
  loop: start=0, step=1, limit=4
  $region2: #{output_forward_planes.1} parent=0 // loop_pre_header
    _
  $region3: #{output_forward_planes.1} parent=0 // loop_header
    %s10 = sphi 0, %s14
    %p11 = scmp.ge.s32.totalorder %s10, 4
    %s17 = sphi 0, %s29
    %s18 = sphi 0, %s25
    %s19 = sphi 0, %s17
    %s20 = sphi 0, %s18
    %s21 = sphi 0, %s19
    %s22 = sphi 0, %s20
    %s34 = sphi 0, %s36
    %s37 = sphi 0, %s34
    %s38 = sphi 0, %s37
    %s54 = sphi 0, %s38
    %s58 = sphi 0, %s58
    %s60 = sphi 0, %s58
    %s61 = sphi 0, %s60
    %s75 = sphi 0, %s61
    %s83 = sphi 0, %s85
    %s86 = sphi 0, %s83
    %s87 = sphi 0, %s86
    %s103 = sphi 0, %s87
    %s111 = sphi 0, %s113
    %s114 = sphi 0, %s111
    %s115 = sphi 0, %s114
    %s131 = sphi 0, %s115
  $region4: #{output_forward_planes.1} parent=0 // loop_header_branch
    %13 = sbr.rel (%p11) target = $region8
  $region5: #{output_forward_planes.1} parent=0 // loop_body
    %s15 = ssub.s32 %s10, 1
    %s16 = ssub.s32 %s10, 2
    %s23 = sadd.s32 1, %s18
    %p24 = scmp.ge.s32.totalorder %s23, 1
    %s25 = scalar_select %p24, 0, %s23
    %s26 = sadd.s32 1, %s17
    %s27 = scalar_select %p24, %s26, %s17
    %p28 = scmp.ge.s32.totalorder %s27, 2
    %s29 = scalar_select %p28, 0, %s27
    %s30 = ssub.s32 %s17, %s29
    %s31 = ssub.s32 %s18, %s25
    %s32 = sor.u32 %s30, %s31
    %p33 = scmp.eq.s32.totalorder %s32, 0
    %s35 = sadd.s32 %s34, 1
    %s36 = scalar_select %p33, %s34, %s35
    %p39 = pneg %p33
    %p40 = scmp.eq.s32.totalorder %s10, 1
    %p41 = por %p39, %p40
    %p42 = scmp.ne.s32.totalorder %s34, %s37
    %p43 = scmp.eq.s32.totalorder %s10, 0
    %p44 = por %p42, %p43
    %p45 = scmp.ne.s32.totalorder %s34, %s37
    %p46 = scmp.eq.s32.totalorder %s15, 1
    %p47 = por %p45, %p46
    %p48 = scmp.ne.s32.totalorder %s37, %s38
    %p49 = scmp.eq.s32.totalorder %s15, 0
    %p50 = por %p48, %p49
    %p51 = scmp.ne.s32.totalorder %s37, %s38
    %p52 = scmp.eq.s32.totalorder %s16, 1
    %p53 = por %p51, %p52
    %p55 = scmp.ne.s32.totalorder %s38, %s54
    %p56 = scmp.eq.s32.totalorder %s16, 0
    %p57 = por %p55, %p56
    %s59 = sadd.s32 %s58, 1
    %p62 = scmp.eq.s32.totalorder %s10, 1
    %p63 = scmp.ne.s32.totalorder %s58, %s60
    %p64 = scmp.eq.s32.totalorder %s10, 0
    %p65 = por %p63, %p64
    %p66 = scmp.ne.s32.totalorder %s58, %s60
    %p67 = scmp.eq.s32.totalorder %s15, 1
    %p68 = por %p66, %p67
    %p69 = scmp.ne.s32.totalorder %s60, %s61
    %p70 = scmp.eq.s32.totalorder %s15, 0
    %p71 = por %p69, %p70
    %p72 = scmp.ne.s32.totalorder %s60, %s61
    %p73 = scmp.eq.s32.totalorder %s16, 1
    %p74 = por %p72, %p73
    %p76 = scmp.ne.s32.totalorder %s61, %s75
    %p77 = scmp.eq.s32.totalorder %s16, 0
    %p78 = por %p76, %p77
    %s79 = ssub.s32 %s17, %s29
    %s80 = ssub.s32 %s18, %s25
    %s81 = sor.u32 %s79, %s80
    %p82 = scmp.eq.s32.totalorder %s81, 0
    %s84 = sadd.s32 %s83, 1
    %s85 = scalar_select %p82, %s83, %s84
    %p88 = pneg %p82
    %p89 = scmp.eq.s32.totalorder %s10, 1
    %p90 = por %p88, %p89
    %p91 = scmp.ne.s32.totalorder %s83, %s86
    %p92 = scmp.eq.s32.totalorder %s10, 0
    %p93 = por %p91, %p92
    %p94 = scmp.ne.s32.totalorder %s83, %s86
    %p95 = scmp.eq.s32.totalorder %s15, 1
    %p96 = por %p94, %p95
    %p97 = scmp.ne.s32.totalorder %s86, %s87
    %p98 = scmp.eq.s32.totalorder %s15, 0
    %p99 = por %p97, %p98
    %p100 = scmp.ne.s32.totalorder %s86, %s87
    %p101 = scmp.eq.s32.totalorder %s16, 1
    %p102 = por %p100, %p101
    %p104 = scmp.ne.s32.totalorder %s87, %s103
    %p105 = scmp.eq.s32.totalorder %s16, 0
    %p106 = por %p104, %p105
    %s107 = ssub.s32 %s17, %s29
    %s108 = ssub.s32 %s18, %s25
    %s109 = sor.u32 %s107, %s108
    %p110 = scmp.eq.s32.totalorder %s109, 0
    %s112 = sadd.s32 %s111, 1
    %s113 = scalar_select %p110, %s111, %s112
    %p116 = pneg %p110
    %p117 = scmp.eq.s32.totalorder %s10, 1
    %p118 = por %p116, %p117
    %p119 = scmp.ne.s32.totalorder %s111, %s114
    %p120 = scmp.eq.s32.totalorder %s10, 0
    %p121 = por %p119, %p120
    %p122 = scmp.ne.s32.totalorder %s111, %s114
    %p123 = scmp.eq.s32.totalorder %s15, 1
    %p124 = por %p122, %p123
    %p125 = scmp.ne.s32.totalorder %s114, %s115
    %p126 = scmp.eq.s32.totalorder %s15, 0
    %p127 = por %p125, %p126
    %p128 = scmp.ne.s32.totalorder %s114, %s115
    %p129 = scmp.eq.s32.totalorder %s16, 1
    %p130 = por %p128, %p129
    %p132 = scmp.ne.s32.totalorder %s115, %s131
    %p133 = scmp.eq.s32.totalorder %s16, 0
    %p134 = por %p132, %p133
    %p135 = scmp.le.s32.totalorder 1, %s10
    %p136 = scmp.lt.s32.totalorder %s10, 3
    %p137 = pnand %p135, %p136
    %p138 = pneg %p137
    // Predicated region
    $region9: #{output_forward_planes.1} parent=5 // pred_check
      _
    $region10: #{output_forward_planes.1} parent=5 // pred_check_branch
      %140 = sbr.rel (%p137) target = $region12
    $region11: #{output_forward_planes.1} parent=5 // pred_region
      %s141 = ssub.s32 %s10, 1
      // Predicated region
      $region13: #{output_forward_planes.1} parent=11 // pred_check
        %p142 = pneg %p71
      $region14: #{output_forward_planes.1} parent=11 // pred_check_branch
        %144 = sbr.rel (%p142) target = $region16
      $region15: #{output_forward_planes.1} parent=11 // pred_region
        _
      $region16: #{output_forward_planes.1} parent=11 // pred_fallthru
        _
    $region12: #{output_forward_planes.1} parent=5 // pred_fallthru
      _
    %p145 = scmp.lt.s32.totalorder %s10, 2
    // Predicated region
    $region17: #{output_forward_planes.1} parent=5 // pred_check
      %p146 = pneg %p145
    $region18: #{output_forward_planes.1} parent=5 // pred_check_branch
      %148 = sbr.rel (%p146) target = $region20
    $region19: #{output_forward_planes.1} parent=5 // pred_region
      // Predicated region
      $region21: #{output_forward_planes.1} parent=19 // pred_check
        %p149 = pneg %p44
      $region22: #{output_forward_planes.1} parent=19 // pred_check_branch
        %151 = sbr.rel (%p149) target = $region24
      $region23: #{output_forward_planes.1} parent=19 // pred_region
        %p152 = scmp.lt.s32.totalorder %s17, 1
        %s153 = scalar_select %p152, %s17, 1
        %p154 = scmp.lt.s32.totalorder %s18, 0
        %s155 = scalar_select %p154, %s18, 0
        %s156 = smul.addr %s155, 2
        %s157 = smul.addr %s153, 2
        %s158 = sadd.s32 %s156, %s157
        %s159 = scalar_lea.vmem %s0, %s158
      $region24: #{output_forward_planes.1} parent=19 // pred_fallthru
        _
    $region20: #{output_forward_planes.1} parent=5 // pred_fallthru
      _
    %p160 = scmp.le.s32.totalorder 1, %s10
    %p161 = scmp.lt.s32.totalorder %s10, 3
    %p162 = pnand %p160, %p161
    %p163 = pneg %p162
    // Predicated region
    $region25: #{output_forward_planes.1} parent=5 // pred_check
      _
    $region26: #{output_forward_planes.1} parent=5 // pred_check_branch
      %165 = sbr.rel (%p162) target = $region28
    $region27: #{output_forward_planes.1} parent=5 // pred_region
      %s166 = ssub.s32 %s10, 1
      %p167 = scmp.lt.s32.totalorder %s19, 1
      %s168 = scalar_select %p167, %s19, 1
      %p169 = scmp.lt.s32.totalorder %s20, 0
      %s170 = scalar_select %p169, %s20, 0
      %s171 = smul.addr %s170, 2
      %s172 = smul.addr %s168, 2
      %s173 = sadd.s32 %s171, %s172
      %s174 = scalar_lea.vmem %s0, %s173
      %p175 = pneg %p50
      %p176 = pneg %p47
      %p177 = pneg %p71
      %p178 = pneg %p68
      %p179 = pneg %p99
      %p180 = pneg %p96
      %p181 = scmp.lt.s32.totalorder %s19, 1
      %s182 = scalar_select %p181, %s19, 1
      %p183 = scmp.lt.s32.totalorder %s20, 0
      %s184 = scalar_select %p183, %s20, 0
      %s185 = smul.addr %s184, 2
      %s186 = smul.addr %s182, 2
      %s187 = sadd.s32 %s185, %s186
      %s188 = scalar_lea.vmem %s2, %s187
      %p189 = pneg %p127
      %p190 = pneg %p124
      %p191 = scmp.lt.s32.totalorder %s19, 1
      %s192 = scalar_select %p191, %s19, 1
      %p193 = scmp.lt.s32.totalorder %s20, 0
      %s194 = scalar_select %p193, %s20, 0
      %s195 = smul.addr %s194, 2
      %s196 = smul.addr %s192, 2
      %s197 = sadd.s32 %s195, %s196
      %s198 = scalar_lea.vmem %s3, %s197
      %p199 = scmp.lt.s32.totalorder %s19, 1
      %s200 = scalar_select %p199, %s19, 1
      %p201 = scmp.lt.s32.totalorder %s20, 0
      %s202 = scalar_select %p201, %s20, 0
      %s203 = smul.addr %s202, 2
      %s204 = smul.addr %s200, 2
      %s205 = sadd.s32 %s203, %s204
      %s206 = scalar_lea.vmem %s0, %s205
      %p207 = scmp.lt.s32.totalorder %s19, 1
      %s208 = scalar_select %p207, %s19, 1
      %p209 = scmp.lt.s32.totalorder %s20, 0
      %s210 = scalar_select %p209, %s20, 0
      %s211 = smul.addr %s210, 2
      %s212 = smul.addr %s208, 2
      %s213 = sadd.s32 %s211, %s212
      %s214 = scalar_lea.vmem %s2, %s213
      %p215 = scmp.lt.s32.totalorder %s19, 1
      %s216 = scalar_select %p215, %s19, 1
      %p217 = scmp.lt.s32.totalorder %s20, 0
      %s218 = scalar_select %p217, %s20, 0
      %s219 = smul.addr %s218, 2
      %s220 = smul.addr %s216, 2
      %s221 = sadd.s32 %s219, %s220
      %s222 = scalar_lea.vmem %s3, %s221
      %v223 = vld [vmem:[%s206] sm:$0x3]
      %v224 = vld [vmem:[%s1] sm:$0x3]
      %v225 = vand.u32 2147483647, %v223
      %vm226 = vcmp.le.f32.partialorder %v225, 0.7853982
      %vm227 = vcmp.lt.s32.totalorder %v223, 0
      %v228 = vand.u32 %v223, 2139095040
      %v229 = vshrl.u32 %v228, 23
      %v230 = vsub.s32 %v229, 127
      %v231 = vand.u32 2147483647, %v223
      %v232 = vand.u32 %v231, 8388607
      %v233 = vor.u32 %v232, 8388608
      %v234 = vsub.s32 0, %v233
      %v235 = vadd.s32 %v230, 1
      %vm236 = vcmp.gt.s32.totalorder %v235, 0
      %v237 = vsel %vm236, %v235, 0
      %v238 = vshrl.u32 %v237, 5
      %v239 = vand.u32 %v237, 31
      %v240 = vsub.s32 32, %v239
      %v241 = vshrl.u32 683565275, %v240
      %v242 = vshll.u32 683565275, %v239
      %v243 = vshrl.u32 2475754826, %v240
      %v244 = vor.u32 %v242, %v243
      %v245 = vshll.u32 2475754826, %v239
      %v246 = vshrl.u32 2131351028, %v240
      %v247 = vor.u32 %v245, %v246
      %v248 = vshll.u32 2131351028, %v239
      %v249 = vshrl.u32 2102212464, %v240
      %v250 = vor.u32 %v248, %v249
      %v251 = vshll.u32 2102212464, %v239
      %v252 = vshrl.u32 920167782, %v240
      %v253 = vor.u32 %v251, %v252
      %v254 = vshll.u32 920167782, %v239
      %v255 = vshrl.u32 1326507024, %v240
      %v256 = vor.u32 %v254, %v255
      %vm257 = vcmp.lt.s32.totalorder %v238, 1
      %vm258 = vcmp.lt.s32.totalorder %v238, 2
      %vm259 = vcmp.lt.s32.totalorder %v238, 3
      %vm260 = vcmp.lt.s32.totalorder %v238, 4
      %v261 = vsel %vm257, %v241, %v244
      %v262 = vsel %vm260, %v250, 2102212464
      %v263 = vsel %vm259, %v247, %v262
      %v264 = vsel %vm258, %v261, %v263
      %v265 = vsel %vm257, %v244, %v247
      %v266 = vsel %vm260, %v253, 920167782
      %v267 = vsel %vm259, %v250, %v266
      %v268 = vsel %vm258, %v265, %v267
      %v269 = vsel %vm257, %v247, %v250
      %v270 = vsel %vm260, %v256, 1326507024
      %v271 = vsel %vm259, %v253, %v270
      %v272 = vsel %vm258, %v269, %v271
      %v273 = vshll.u32 %v233, 8
      %v274 = vmul.u32.u64.compose %v273, %v272
      %v275 = vextract.low.u32 %v274
      %v276 = vextract.high.u32 %v274
      %v277 = vmul.u32.u64.compose %v273, %v268
      %v278 = vextract.low.u32 %v277
      %v279 = vextract.high.u32 %v277
      %v280 = vmul.u32 %v273, %v264
      %v281 = vadd.s32 %v276, %v278
      %vm282 = vc.u32 %v276, %v278
      %v283 = vadd.s32 %v279, 1
      %v284 = vsel %vm282, %v283, %v279
      %v285 = vadd.s32 %v280, %v284
      %v286 = vadd.s32 %v285, 536870912
      %v287 = vshrl.u32 %v286, 30
      %v288 = vshll.u32 %v287, 30
      %v289 = vsub.s32 %v285, %v288
      %vm290 = vcmp.lt.s32.totalorder %v289, 0
      %v291 = vsub.s32 0, %v289
      %v292 = vsel %vm290, %v291, %v289
      %v293 = vclz %v292
      %v294 = vsub.s32 %v293, 2
      %vm295 = vcmp.gt.s32.totalorder 0, %v294
      %v296 = vsel %vm295, 0, %v294
      %v297 = vsub.s32 32, %v296
      %v298 = vshll.u32 %v289, %v296
      %v299 = vshrl.u32 %v281, %v297
      %v300 = vor.u32 %v298, %v299
      %v301 = vsub.s32 4294967266, %v296
      %v302 = vadd.s32 %v301, 127
      %v303 = vshll.u32 %v302, 23
      %v304 = vor.u32 4788187, %v303
      %v305 = vand.u32 2147483647, %v304
      %v307 = vcvt.s32.f32 %v300
      %v308 = vmul.f32 %v307, %v305
      %v309 = vxor.u32 %v308, 2147483648
      %v310 = vsel %vm227, %v309, %v308
      %v311 = vsub.s32 4, %v287
      %v312 = vsel %vm227, %v311, %v287
      %v313 = vsel %vm226, %v223, %v310
      %v314 = vsel %vm226, 0, %v312
      %v315 = vcosq.f32.pop %v313
      %v316 = vsinq.f32.pop %v313
      %vm317 = vweird.f32 %v223
      %v318 = vand.u32 %v314, 3
      %vm319 = vcmp.lt.s32.totalorder %v318, 2
      %vm320 = vcmp.eq.s32.totalorder %v318, 0
      %v321 = vxor.u32 %v316, 2147483648
      %v322 = vsel %vm320, %v315, %v321
      %vm323 = vcmp.eq.s32.totalorder %v318, 2
      %v324 = vxor.u32 %v315, 2147483648
      %v325 = vsel %vm323, %v324, %v316
      %v326 = vsel %vm319, %v322, %v325
      %v327 = vsel %vm317, nan, %v326
      %v328 = vmul.f32 %v224, %v327
      %v329 = vlaneseq
      %vm330 = vcmp.ge.s32.totalorder %v329, 0
      %vm331 = vcmp.lt.s32.totalorder %v329, 256
      %vm332 = vmand %vm330, %vm331
      %333 = vst.msk [vmem:[%s214] sm:$0x3] %vm332, %v328
      %v334 = vand.u32 2147483647, %v223
      %vm335 = vcmp.le.f32.partialorder %v334, 0.7853982
      %vm336 = vcmp.lt.s32.totalorder %v223, 0
      %v337 = vand.u32 %v223, 2139095040
      %v338 = vshrl.u32 %v337, 23
      %v339 = vsub.s32 %v338, 127
      %v340 = vand.u32 2147483647, %v223
      %v341 = vand.u32 %v340, 8388607
      %v342 = vor.u32 %v341, 8388608
      %v343 = vsub.s32 0, %v342
      %v344 = vadd.s32 %v339, 1
      %vm345 = vcmp.gt.s32.totalorder %v344, 0
      %v346 = vsel %vm345, %v344, 0
      %v347 = vshrl.u32 %v346, 5
      %v348 = vand.u32 %v346, 31
      %v349 = vsub.s32 32, %v348
      %v350 = vshrl.u32 683565275, %v349
      %v351 = vshll.u32 683565275, %v348
      %v352 = vshrl.u32 2475754826, %v349
      %v353 = vor.u32 %v351, %v352
      %v354 = vshll.u32 2475754826, %v348
      %v355 = vshrl.u32 2131351028, %v349
      %v356 = vor.u32 %v354, %v355
      %v357 = vshll.u32 2131351028, %v348
      %v358 = vshrl.u32 2102212464, %v349
      %v359 = vor.u32 %v357, %v358
      %v360 = vshll.u32 2102212464, %v348
      %v361 = vshrl.u32 920167782, %v349
      %v362 = vor.u32 %v360, %v361
      %v363 = vshll.u32 920167782, %v348
      %v364 = vshrl.u32 1326507024, %v349
      %v365 = vor.u32 %v363, %v364
      %vm366 = vcmp.lt.s32.totalorder %v347, 1
      %vm367 = vcmp.lt.s32.totalorder %v347, 2
      %vm368 = vcmp.lt.s32.totalorder %v347, 3
      %vm369 = vcmp.lt.s32.totalorder %v347, 4
      %v370 = vsel %vm366, %v350, %v353
      %v371 = vsel %vm369, %v359, 2102212464
      %v372 = vsel %vm368, %v356, %v371
      %v373 = vsel %vm367, %v370, %v372
      %v374 = vsel %vm366, %v353, %v356
      %v375 = vsel %vm369, %v362, 920167782
      %v376 = vsel %vm368, %v359, %v375
      %v377 = vsel %vm367, %v374, %v376
      %v378 = vsel %vm366, %v356, %v359
      %v379 = vsel %vm369, %v365, 1326507024
      %v380 = vsel %vm368, %v362, %v379
      %v381 = vsel %vm367, %v378, %v380
      %v382 = vshll.u32 %v342, 8
      %v383 = vmul.u32.u64.compose %v382, %v381
      %v384 = vextract.low.u32 %v383
      %v385 = vextract.high.u32 %v383
      %v386 = vmul.u32.u64.compose %v382, %v377
      %v387 = vextract.low.u32 %v386
      %v388 = vextract.high.u32 %v386
      %v389 = vmul.u32 %v382, %v373
      %v390 = vadd.s32 %v385, %v387
      %vm391 = vc.u32 %v385, %v387
      %v392 = vadd.s32 %v388, 1
      %v393 = vsel %vm391, %v392, %v388
      %v394 = vadd.s32 %v389, %v393
      %v395 = vadd.s32 %v394, 536870912
      %v396 = vshrl.u32 %v395, 30
      %v397 = vshll.u32 %v396, 30
      %v398 = vsub.s32 %v394, %v397
      %vm399 = vcmp.lt.s32.totalorder %v398, 0
      %v400 = vsub.s32 0, %v398
      %v401 = vsel %vm399, %v400, %v398
      %v402 = vclz %v401
      %v403 = vsub.s32 %v402, 2
      %vm404 = vcmp.gt.s32.totalorder 0, %v403
      %v405 = vsel %vm404, 0, %v403
      %v406 = vsub.s32 32, %v405
      %v407 = vshll.u32 %v398, %v405
      %v408 = vshrl.u32 %v390, %v406
      %v409 = vor.u32 %v407, %v408
      %v410 = vsub.s32 4294967266, %v405
      %v411 = vadd.s32 %v410, 127
      %v412 = vshll.u32 %v411, 23
      %v413 = vor.u32 4788187, %v412
      %v414 = vand.u32 2147483647, %v413
      %v416 = vcvt.s32.f32 %v409
      %v417 = vmul.f32 %v416, %v414
      %v418 = vxor.u32 %v417, 2147483648
      %v419 = vsel %vm336, %v418, %v417
      %v420 = vsub.s32 4, %v396
      %v421 = vsel %vm336, %v420, %v396
      %v422 = vsel %vm335, %v223, %v419
      %v423 = vsel %vm335, 0, %v421
      %v424 = vcosq.f32.pop %v422
      %v425 = vsinq.f32.pop %v422
      %vm426 = vweird.f32 %v223
      %v427 = vadd.s32 %v423, 3
      %v428 = vand.u32 %v427, 3
      %vm429 = vcmp.lt.s32.totalorder %v428, 2
      %vm430 = vcmp.eq.s32.totalorder %v428, 0
      %v431 = vxor.u32 %v425, 2147483648
      %v432 = vsel %vm430, %v424, %v431
      %vm433 = vcmp.eq.s32.totalorder %v428, 2
      %v434 = vxor.u32 %v424, 2147483648
      %v435 = vsel %vm433, %v434, %v425
      %v436 = vsel %vm429, %v432, %v435
      %v437 = vsel %vm426, nan, %v436
      %v438 = vmul.f32 %v224, %v437
      %439 = vst.msk [vmem:[%s222] sm:$0x3] %vm332, %v438
      %p440 = scmp.lt.s32.totalorder %s19, 1
      %s441 = scalar_select %p440, %s19, 1
      %p442 = scmp.lt.s32.totalorder %s20, 0
      %s443 = scalar_select %p442, %s20, 0
      %s444 = smul.addr %s443, 2
      %s445 = smul.addr %s441, 2
      %s446 = sadd.s32 %s444, %s445
      %s447 = scalar_lea.vmem %s2, %s446
      %p448 = scmp.lt.s32.totalorder %s19, 1
      %s449 = scalar_select %p448, %s19, 1
      %p450 = scmp.lt.s32.totalorder %s20, 0
      %s451 = scalar_select %p450, %s20, 0
      %s452 = smul.addr %s451, 2
      %s453 = smul.addr %s449, 2
      %s454 = sadd.s32 %s452, %s453
      %s455 = scalar_lea.vmem %s3, %s454
      // Predicated region
      $region29: #{output_forward_planes.1} parent=27 // pred_check
        %p456 = pneg %p96
      $region30: #{output_forward_planes.1} parent=27 // pred_check_branch
        %458 = sbr.rel (%p456) target = $region32
      $region31: #{output_forward_planes.1} parent=27 // pred_region
        _
      $region32: #{output_forward_planes.1} parent=27 // pred_fallthru
        _
      // Predicated region
      $region33: #{output_forward_planes.1} parent=27 // pred_check
        %p459 = pneg %p124
      $region34: #{output_forward_planes.1} parent=27 // pred_check_branch
        %461 = sbr.rel (%p459) target = $region36
      $region35: #{output_forward_planes.1} parent=27 // pred_region
        _
      $region36: #{output_forward_planes.1} parent=27 // pred_fallthru
        _
    $region28: #{output_forward_planes.1} parent=5 // pred_fallthru
      _
    %p462 = scmp.le.s32.totalorder 2, %s10
    // Predicated region
    $region37: #{output_forward_planes.1} parent=5 // pred_check
      %p463 = pneg %p462
    $region38: #{output_forward_planes.1} parent=5 // pred_check_branch
      %465 = sbr.rel (%p463) target = $region40
    $region39: #{output_forward_planes.1} parent=5 // pred_region
      %s466 = ssub.s32 %s10, 2
      // Predicated region
      $region41: #{output_forward_planes.1} parent=39 // pred_check
        %p467 = pneg %p102
      $region42: #{output_forward_planes.1} parent=39 // pred_check_branch
        %469 = sbr.rel (%p467) target = $region44
      $region43: #{output_forward_planes.1} parent=39 // pred_region
        %p470 = scmp.lt.s32.totalorder %s21, 1
        %s471 = scalar_select %p470, %s21, 1
        %p472 = scmp.lt.s32.totalorder %s22, 0
        %s473 = scalar_select %p472, %s22, 0
        %s474 = smul.addr %s473, 2
        %s475 = smul.addr %s471, 2
        %s476 = sadd.s32 %s474, %s475
        %s477 = scalar_lea.vmem %s2, %s476
      $region44: #{output_forward_planes.1} parent=39 // pred_fallthru
        _
      // Predicated region
      $region45: #{output_forward_planes.1} parent=39 // pred_check
        %p478 = pneg %p130
      $region46: #{output_forward_planes.1} parent=39 // pred_check_branch
        %480 = sbr.rel (%p478) target = $region48
      $region47: #{output_forward_planes.1} parent=39 // pred_region
        %p481 = scmp.lt.s32.totalorder %s21, 1
        %s482 = scalar_select %p481, %s21, 1
        %p483 = scmp.lt.s32.totalorder %s22, 0
        %s484 = scalar_select %p483, %s22, 0
        %s485 = smul.addr %s484, 2
        %s486 = smul.addr %s482, 2
        %s487 = sadd.s32 %s485, %s486
        %s488 = scalar_lea.vmem %s3, %s487
      $region48: #{output_forward_planes.1} parent=39 // pred_fallthru
        _
    $region40: #{output_forward_planes.1} parent=5 // pred_fallthru
      _
  $region6: #{output_forward_planes.1} parent=0 // loop_footer
    %s14 = sadd.s32 1, %s10
  $region7: #{output_forward_planes.1} parent=0 // loop_footer_branch
    %9 = sbr.rel target = $region3
  $region8: #{output_forward_planes.1} parent=0 // loop_exit
    _

</llo_original>
